<compile_context>
chip_gen: v6e
topology: v6e:2x2x1
jax: 0.10.0
libtpu: 0.0.40
codegen_flags: <defaults>
</compile_context>

<pallas_src>
import functools

import jax
import jax.numpy as jnp
from jax.experimental import pallas as pl
from jax.experimental.pallas import tpu as pltpu


def _round_up(x, m):
    return ((x + m - 1) // m) * m


# --------------------------------------------------------------------------
# Kernel 1: conv-as-matmul + per-tile partial BN statistics.
# --------------------------------------------------------------------------
def _conv_stats_kernel(p_ref, w_ref, out_ref, stats_ref):
    """p_ref: (tile_m, K_pad) im2col patches, w_ref: (K_pad, C_pad) weights.

    out_ref:   (tile_m, C_pad) conv output for this row tile (f32).
    stats_ref: (2, C_pad) per-tile [sum; sum_of_squares] (reduced in XLA).
    """
    acc = jnp.dot(p_ref[...], w_ref[...], preferred_element_type=jnp.float32)
    out_ref[...] = acc

    s1 = jnp.sum(acc, axis=0, keepdims=True)          # (1, C_pad)
    s2 = jnp.sum(acc * acc, axis=0, keepdims=True)    # (1, C_pad)
    stats_ref[...] = jnp.concatenate([s1, s2], axis=0)


# --------------------------------------------------------------------------
# Kernel 2: fused BatchNorm (precomputed scale/bias) + ReLU.
# --------------------------------------------------------------------------
def _bn_relu_kernel(y_ref, scale_ref, bias_ref, o_ref):
    y = y_ref[...]
    out = y * scale_ref[...] + bias_ref[...]
    o_ref[...] = jnp.maximum(out, 0.0).astype(o_ref.dtype)


def _pick_tile_m(M, K_pad, C_pad, tile_m):
    """Choose a row-tile: multiple of 8, >=2 tiles when possible, fits VMEM."""
    tile_m = min(tile_m, _round_up(max(8, (M + 1) // 2), 8))

    def vmem_bytes(t):
        # double-buffered patches + conv-out blocks, resident weight (x2 bufs),
        # tiny stats block.
        return 4 * (2 * t * K_pad + 2 * t * C_pad + 2 * K_pad * C_pad
                    + 2 * 2 * C_pad)

    budget = 24 * 1024 * 1024
    while tile_m > 8 and vmem_bytes(tile_m) > budget:
        tile_m //= 2
    return max(8, _round_up(tile_m, 8))


# --------------------------------------------------------------------------
# Wrapper: NCHW in / NCHW out, PyTorch-style weight (Cout, Cin, KH, KW).
# --------------------------------------------------------------------------
def extract_forward(x, weight, gamma, beta, *, stride=1, padding=1,
                    eps=1e-5, tile_m=512):
    N, Cin, H, W = x.shape
    Cout, _, KH, KW = weight.shape
    Ho = (H + 2 * padding - KH) // stride + 1
    Wo = (W + 2 * padding - KW) // stride + 1

    # NCHW -> NHWC, pad the spatial halo once (outside the kernels); channels
    # land on the 128-lane axis.
    xh = jnp.transpose(x, (0, 2, 3, 1)).astype(jnp.float32)
    xp = jnp.pad(xh, ((0, 0), (padding, padding), (padding, padding), (0, 0)))

    # im2col: fold the KH*KW taps into the contraction axis so the conv is a
    # single well-shaped MXU matmul (K = KH*KW*Cin).
    taps = []
    for dy in range(KH):
        for dx in range(KW):
            taps.append(xp[:, dy:dy + stride * Ho:stride,
                           dx:dx + stride * Wo:stride, :])
    K = KH * KW * Cin
    patches = jnp.concatenate(taps, axis=-1).reshape(N * Ho * Wo, K)

    # Pad K and Cout to 128 multiples -> every kernel load/store is lane-dense.
    K_pad = _round_up(K, 128)
    C_pad = _round_up(Cout, 128)
    M = N * Ho * Wo
    tm = _pick_tile_m(M, K_pad, C_pad, tile_m)
    M_pad = _round_up(M, tm)
    num_tiles = M_pad // tm

    patches = jnp.pad(patches, ((0, M_pad - M), (0, K_pad - K)))
    w2 = jnp.transpose(weight, (2, 3, 1, 0)).reshape(K, Cout).astype(jnp.float32)
    w2 = jnp.pad(w2, ((0, K_pad - K), (0, C_pad - Cout)))

    grid = (num_tiles,)

    conv_out, part_stats = pl.pallas_call(
        _conv_stats_kernel,
        grid=grid,
        in_specs=[
            pl.BlockSpec((tm, K_pad), lambda i: (i, 0)),
            pl.BlockSpec((K_pad, C_pad), lambda i: (0, 0)),   # VMEM-resident
        ],
        out_specs=(
            pl.BlockSpec((tm, C_pad), lambda i: (i, 0)),
            pl.BlockSpec((None, 2, C_pad), lambda i: (i, 0, 0)),
        ),
        out_shape=(
            jax.ShapeDtypeStruct((M_pad, C_pad), jnp.float32),
            jax.ShapeDtypeStruct((num_tiles, 2, C_pad), jnp.float32),
        ),
        compiler_params=pltpu.CompilerParams(
            dimension_semantics=("parallel",)),   # per-tile stats -> no dep
    )(patches, w2)

    # Batch statistics (training-mode BatchNorm2d: biased variance over N,H,W).
    # Zero-padded rows/channels contribute 0 to both sums, so dividing by the
    # true element count M gives exact statistics.
    stats = jnp.sum(part_stats, axis=0)            # (2, C_pad)
    count = jnp.float32(M)
    mean = stats[0] / count
    var = jnp.maximum(stats[1] / count - mean * mean, 0.0)

    g = jnp.pad(gamma.astype(jnp.float32), (0, C_pad - Cout))
    b = jnp.pad(beta.astype(jnp.float32), (0, C_pad - Cout))
    scale = g * jax.lax.rsqrt(var + eps)
    bias = b - mean * scale
    scale = scale.reshape(1, C_pad)
    bias = bias.reshape(1, C_pad)

    out = pl.pallas_call(
        _bn_relu_kernel,
        grid=grid,
        in_specs=[
            pl.BlockSpec((tm, C_pad), lambda i: (i, 0)),
            pl.BlockSpec((1, C_pad), lambda i: (0, 0)),
            pl.BlockSpec((1, C_pad), lambda i: (0, 0)),
        ],
        out_specs=pl.BlockSpec((tm, C_pad), lambda i: (i, 0)),
        out_shape=jax.ShapeDtypeStruct((M_pad, C_pad), x.dtype),
        compiler_params=pltpu.CompilerParams(
            dimension_semantics=("parallel",)),    # no cross-tile dependence
    )(conv_out, scale, bias)

    out = out[:M, :Cout].reshape(N, Ho, Wo, Cout)
    return jnp.transpose(out, (0, 3, 1, 2))        # back to NCHW


class Extract:
    """JAX/Pallas port of the PyTorch Extract module (Conv2d+BN+ReLU)."""

    def __init__(self, channel_in, channel_out, kernel_size=3, stride=1,
                 padding=1, affine=True, eps=1e-5, key=None):
        self.channel_in = channel_in
        self.channel_out = channel_out
        self.kernel_size = kernel_size
        self.stride = stride
        self.padding = padding
        self.affine = affine
        self.eps = eps

        if key is None:
            key = jax.random.PRNGKey(0)
        fan_in = channel_in * kernel_size * kernel_size
        bound = 1.0 / float(fan_in) ** 0.5
        self.weight = jax.random.uniform(
            key, (channel_out, channel_in, kernel_size, kernel_size),
            jnp.float32, -bound, bound)
        # affine=True -> learnable gamma/beta initialized to 1/0; affine=False
        # is numerically identical at init (gamma=1, beta=0).
        self.gamma = jnp.ones((channel_out,), jnp.float32)
        self.beta = jnp.zeros((channel_out,), jnp.float32)
        # TODO(synk): BatchNorm running-stat buffer updates (momentum) are not
        # modeled; forward output uses batch statistics (torch training mode).

        self._fwd = jax.jit(functools.partial(
            extract_forward, stride=self.stride, padding=self.padding,
            eps=self.eps))

    def __call__(self, x):
        return self._fwd(x, self.weight, self.gamma, self.beta)


# --------------------------------------------------------------------------
# Pure-JAX reference mirroring the PyTorch forward (training-mode BN).
# --------------------------------------------------------------------------
def _reference_forward(x, weight, gamma, beta, eps, stride, padding):
    y = jax.lax.conv_general_dilated(
        x, weight, window_strides=(stride, stride),
        padding=((padding, padding), (padding, padding)),
        dimension_numbers=("NCHW", "OIHW", "NCHW"))
    mean = jnp.mean(y, axis=(0, 2, 3), keepdims=True)
    var = jnp.mean((y - mean) ** 2, axis=(0, 2, 3), keepdims=True)
    yhat = (y - mean) / jnp.sqrt(var + eps)
    out = yhat * gamma.reshape(1, -1, 1, 1) + beta.reshape(1, -1, 1, 1)
    return jnp.maximum(out, 0.0)


if __name__ == "__main__":
    N, Cin, H, W = 2, 4, 16, 16
    Cout = 32

    key = jax.random.PRNGKey(0)
    kx, kw = jax.random.split(key)
    x = jax.random.normal(kx, (N, Cin, H, W), jnp.float32)

    model = Extract(channel_in=Cin, channel_out=Cout, kernel_size=3,
                    stride=1, padding=1, affine=True, key=kw)

    out = model(x)
    out = jax.block_until_ready(out)

    ref = _reference_forward(x, model.weight, model.gamma, model.beta,
                             model.eps, model.stride, model.padding)

    assert out.shape == (N, Cout, H, W), out.shape
    max_err = float(jnp.max(jnp.abs(out - ref)))
    assert jnp.allclose(out, ref, atol=1e-4, rtol=1e-4), max_err

    print("KERNEL_OK")
</pallas_src>

<mosaic_0001>
module attributes {stable_mosaic.version = 11 : i64} {
  func.func @_conv_stats_kernel(%arg0: i32, %arg1: memref<256x128xf32, #tpu.memory_space<vmem>>, %arg2: memref<128x128xf32, #tpu.memory_space<vmem>>, %arg3: memref<256x128xf32, #tpu.memory_space<vmem>>, %arg4: memref<1x2x128xf32, #tpu.memory_space<vmem>>) attributes {dimension_semantics = [#tpu.dimension_semantics<parallel>], iteration_bounds = array<i64: 2>, scalar_prefetch = 0 : i64, scratch_operands = 0 : i64, tpu.core_type = #tpu.core_type<tc>, window_params = [{transform_indices = @transform_0, window_bounds = array<i64: 256, 128>}, {pipeline_mode = #tpu.pipeline_mode<synchronous>, transform_indices = @transform_1, window_bounds = array<i64: 128, 128>}, {transform_indices = @transform_2, window_bounds = array<i64: 256, 128>}, {transform_indices = @transform_3, window_bounds = array<i64: 1, 2, 128>}]} {
    %c0 = arith.constant 0 : index
    %c0_0 = arith.constant 0 : index
    %0 = vector.load %arg1[%c0, %c0_0] : memref<256x128xf32, #tpu.memory_space<vmem>>, vector<256x128xf32>
    %c0_1 = arith.constant 0 : index
    %c0_2 = arith.constant 0 : index
    %1 = vector.load %arg2[%c0_1, %c0_2] : memref<128x128xf32, #tpu.memory_space<vmem>>, vector<128x128xf32>
    %cst = arith.constant dense<0.000000e+00> : vector<256x128xf32>
    %2 = tpu.matmul %0, %1, %cst {dimension_numbers = #tpu.dot_dimension_numbers<[1], [0], [0], [1], [0, 0, 1, 1], [], []>} : vector<256x128xf32>, vector<128x128xf32>, vector<256x128xf32> -> vector<256x128xf32>
    %c0_3 = arith.constant 0 : index
    %c0_4 = arith.constant 0 : index
    %3 = vector.load %arg3[%c0_3, %c0_4] : memref<256x128xf32, #tpu.memory_space<vmem>>, vector<256x128xf32>
    tpu.vector_store %arg3[%c0_3, %c0_4], %2 {strides = array<i32>} : memref<256x128xf32, #tpu.memory_space<vmem>>, vector<256x128xf32>,
    %cst_5 = arith.constant dense<0.000000e+00> : vector<128xf32>
    %4 = vector.multi_reduction <add>, %2, %cst_5 [0] : vector<256x128xf32> to vector<128xf32>
    %5 = vector.shape_cast %4 : vector<128xf32> to vector<1x128xf32>
    %6 = arith.mulf %2, %2 : vector<256x128xf32>
    %cst_6 = arith.constant dense<0.000000e+00> : vector<128xf32>
    %7 = vector.multi_reduction <add>, %6, %cst_6 [0] : vector<256x128xf32> to vector<128xf32>
    %8 = vector.shape_cast %7 : vector<128xf32> to vector<1x128xf32>
    %9 = tpu.concatenate %5, %8 in 0 : vector<1x128xf32>, vector<1x128xf32> -> vector<2x128xf32>
    %c0_7 = arith.constant 0 : index
    %c0_8 = arith.constant 0 : index
    %c0_9 = arith.constant 0 : index
    %10 = vector.load %arg4[%c0_7, %c0_8, %c0_9] : memref<1x2x128xf32, #tpu.memory_space<vmem>>, vector<1x2x128xf32>
    %11 = vector.shape_cast %10 : vector<1x2x128xf32> to vector<2x128xf32>
    %12 = vector.shape_cast %9 : vector<2x128xf32> to vector<1x2x128xf32>
    tpu.vector_store %arg4[%c0_7, %c0_8, %c0_9], %12 {strides = array<i32>} : memref<1x2x128xf32, #tpu.memory_space<vmem>>, vector<1x2x128xf32>,
    return
  }
  func.func @transform_0(%arg0: i32) -> (i32, i32) {
    %c0_i32 = arith.constant 0 : i32
    %c0_i32_0 = arith.constant 0 : i32
    return %arg0, %c0_i32 : i32, i32
  }
  func.func @transform_1(%arg0: i32) -> (i32, i32) {
    %c0_i32 = arith.constant 0 : i32
    %c0_i32_0 = arith.constant 0 : i32
    %c0_i32_1 = arith.constant 0 : i32
    return %c0_i32, %c0_i32_0 : i32, i32
  }
  func.func @transform_2(%arg0: i32) -> (i32, i32) {
    %c0_i32 = arith.constant 0 : i32
    %c0_i32_0 = arith.constant 0 : i32
    return %arg0, %c0_i32 : i32, i32
  }
  func.func @transform_3(%arg0: i32) -> (i32, i32, i32) {
    %c0_i32 = arith.constant 0 : i32
    %c0_i32_0 = arith.constant 0 : i32
    %c0_i32_1 = arith.constant 0 : i32
    return %arg0, %c0_i32, %c0_i32_0 : i32, i32, i32
  }
}

module attributes {stable_mosaic.version = 11 : i64} {
  func.func @_bn_relu_kernel(%arg0: i32, %arg1: memref<256x128xf32, #tpu.memory_space<vmem>>, %arg2: memref<1x128xf32, #tpu.memory_space<vmem>>, %arg3: memref<1x128xf32, #tpu.memory_space<vmem>>, %arg4: memref<256x128xf32, #tpu.memory_space<vmem>>) attributes {dimension_semantics = [#tpu.dimension_semantics<parallel>], iteration_bounds = array<i64: 2>, scalar_prefetch = 0 : i64, scratch_operands = 0 : i64, tpu.core_type = #tpu.core_type<tc>, window_params = [{transform_indices = @transform_0, window_bounds = array<i64: 256, 128>}, {pipeline_mode = #tpu.pipeline_mode<synchronous>, transform_indices = @transform_1, window_bounds = array<i64: 1, 128>}, {pipeline_mode = #tpu.pipeline_mode<synchronous>, transform_indices = @transform_2, window_bounds = array<i64: 1, 128>}, {transform_indices = @transform_3, window_bounds = array<i64: 256, 128>}]} {
    %c0 = arith.constant 0 : index
    %c0_0 = arith.constant 0 : index
    %0 = vector.load %arg1[%c0, %c0_0] : memref<256x128xf32, #tpu.memory_space<vmem>>, vector<256x128xf32>
    %c0_1 = arith.constant 0 : index
    %c0_2 = arith.constant 0 : index
    %1 = vector.load %arg2[%c0_1, %c0_2] : memref<1x128xf32, #tpu.memory_space<vmem>>, vector<1x128xf32>
    %2 = vector.broadcast %1 : vector<1x128xf32> to vector<256x128xf32>
    %3 = arith.mulf %0, %2 : vector<256x128xf32>
    %c0_3 = arith.constant 0 : index
    %c0_4 = arith.constant 0 : index
    %4 = vector.load %arg3[%c0_3, %c0_4] : memref<1x128xf32, #tpu.memory_space<vmem>>, vector<1x128xf32>
    %5 = vector.broadcast %4 : vector<1x128xf32> to vector<256x128xf32>
    %6 = arith.addf %3, %5 : vector<256x128xf32>
    %cst = arith.constant 0.000000e+00 : f32
    %7 = vector.broadcast %cst : f32 to vector<256x128xf32>
    %8 = arith.maximumf %6, %7 : vector<256x128xf32>
    %c0_5 = arith.constant 0 : index
    %c0_6 = arith.constant 0 : index
    %9 = vector.load %arg4[%c0_5, %c0_6] : memref<256x128xf32, #tpu.memory_space<vmem>>, vector<256x128xf32>
    tpu.vector_store %arg4[%c0_5, %c0_6], %8 {strides = array<i32>} : memref<256x128xf32, #tpu.memory_space<vmem>>, vector<256x128xf32>,
    return
  }
  func.func @transform_0(%arg0: i32) -> (i32, i32) {
    %c0_i32 = arith.constant 0 : i32
    %c0_i32_0 = arith.constant 0 : i32
    return %arg0, %c0_i32 : i32, i32
  }
  func.func @transform_1(%arg0: i32) -> (i32, i32) {
    %c0_i32 = arith.constant 0 : i32
    %c0_i32_0 = arith.constant 0 : i32
    %c0_i32_1 = arith.constant 0 : i32
    return %c0_i32, %c0_i32_0 : i32, i32
  }
  func.func @transform_2(%arg0: i32) -> (i32, i32) {
    %c0_i32 = arith.constant 0 : i32
    %c0_i32_0 = arith.constant 0 : i32
    %c0_i32_1 = arith.constant 0 : i32
    return %c0_i32, %c0_i32_0 : i32, i32
  }
  func.func @transform_3(%arg0: i32) -> (i32, i32) {
    %c0_i32 = arith.constant 0 : i32
    %c0_i32_0 = arith.constant 0 : i32
    return %arg0, %c0_i32 : i32, i32
  }
}

</mosaic_0001>

<llo_original>
// kernel: extract_forward.2
$region0: #{extract_forward.2}
  #allocation0 [shape = 'u32[]', space=smem, size = 0x4, offset = 0x4, fixed_abs, tag = 'smem constant byte address 0x4 - core index']
  #allocation1 [shape = 'u32[144,128]{1,0:T(1,128)}', space=vmem, size = 0x12000, scoped, tag = 'internal scratch']
  %s0 = inlined_call_operand.vmem [shape: f32[512,128], index: 0, kind: input, shape index: {}]
  %s1 = inlined_call_operand.vmem [shape: f32[128,128], index: 1, kind: input, shape index: {}]
  %s2 = inlined_call_operand.vmem [shape: f32[512,128], index: 2, kind: output, shape index: {0}]
  %s3 = inlined_call_operand.vmem [shape: f32[2,2,128], index: 3, kind: output, shape index: {1}]
  %4 = xla_tuple %s2, %s3
  %s5 = sld [smem:[#allocation0]]
  $region49: #{extract_forward.2} parent=0
    _
  %s7 = ssub.s32 1, %s5
  %s8 = scalar_select 0, %s7, %s5
  loop: start=0, step=1, limit=4
  $region2: #{extract_forward.2} parent=0 // loop_pre_header
    _
  $region3: #{extract_forward.2} parent=0 // loop_header
    %s10 = sphi 0, %s14
    %p11 = scmp.ge.s32.totalorder %s10, 4
    %s20 = sphi 0, %s22
    %s23 = sphi 0, %s20
    %s24 = sphi 0, %s23
    %s40 = sphi 0, %s24
    %s44 = sphi 0, %s44
    %s46 = sphi 0, %s44
    %s47 = sphi 0, %s46
    %s61 = sphi 0, %s47
    %s67 = sphi 0, %s69
    %s70 = sphi 0, %s67
    %s71 = sphi 0, %s70
    %s87 = sphi 0, %s71
    %s93 = sphi 0, %s95
    %s96 = sphi 0, %s93
    %s97 = sphi 0, %s96
    %s113 = sphi 0, %s97
  $region4: #{extract_forward.2} parent=0 // loop_header_branch
    %13 = sbr.rel (%p11) target = $region8
  $region5: #{extract_forward.2} parent=0 // loop_body
    %s15 = ssub.s32 %s10, 1
    %s16 = ssub.s32 %s10, 2
    %s17 = sadd.s32 %s10, 1
    %s18 = ssub.s32 %s10, %s17
    %p19 = scmp.eq.s32.totalorder %s18, 0
    %s21 = sadd.s32 %s20, 1
    %s22 = scalar_select %p19, %s20, %s21
    %p25 = pneg %p19
    %p26 = scmp.eq.s32.totalorder %s10, 1
    %p27 = por %p25, %p26
    %p28 = scmp.ne.s32.totalorder %s20, %s23
    %p29 = scmp.eq.s32.totalorder %s10, 0
    %p30 = por %p28, %p29
    %p31 = scmp.ne.s32.totalorder %s20, %s23
    %p32 = scmp.eq.s32.totalorder %s15, 1
    %p33 = por %p31, %p32
    %p34 = scmp.ne.s32.totalorder %s23, %s24
    %p35 = scmp.eq.s32.totalorder %s15, 0
    %p36 = por %p34, %p35
    %p37 = scmp.ne.s32.totalorder %s23, %s24
    %p38 = scmp.eq.s32.totalorder %s16, 1
    %p39 = por %p37, %p38
    %p41 = scmp.ne.s32.totalorder %s24, %s40
    %p42 = scmp.eq.s32.totalorder %s16, 0
    %p43 = por %p41, %p42
    %s45 = sadd.s32 %s44, 1
    %p48 = scmp.eq.s32.totalorder %s10, 1
    %p49 = scmp.ne.s32.totalorder %s44, %s46
    %p50 = scmp.eq.s32.totalorder %s10, 0
    %p51 = por %p49, %p50
    %p52 = scmp.ne.s32.totalorder %s44, %s46
    %p53 = scmp.eq.s32.totalorder %s15, 1
    %p54 = por %p52, %p53
    %p55 = scmp.ne.s32.totalorder %s46, %s47
    %p56 = scmp.eq.s32.totalorder %s15, 0
    %p57 = por %p55, %p56
    %p58 = scmp.ne.s32.totalorder %s46, %s47
    %p59 = scmp.eq.s32.totalorder %s16, 1
    %p60 = por %p58, %p59
    %p62 = scmp.ne.s32.totalorder %s47, %s61
    %p63 = scmp.eq.s32.totalorder %s16, 0
    %p64 = por %p62, %p63
    %s65 = ssub.s32 %s10, %s17
    %p66 = scmp.eq.s32.totalorder %s65, 0
    %s68 = sadd.s32 %s67, 1
    %s69 = scalar_select %p66, %s67, %s68
    %p72 = pneg %p66
    %p73 = scmp.eq.s32.totalorder %s10, 1
    %p74 = por %p72, %p73
    %p75 = scmp.ne.s32.totalorder %s67, %s70
    %p76 = scmp.eq.s32.totalorder %s10, 0
    %p77 = por %p75, %p76
    %p78 = scmp.ne.s32.totalorder %s67, %s70
    %p79 = scmp.eq.s32.totalorder %s15, 1
    %p80 = por %p78, %p79
    %p81 = scmp.ne.s32.totalorder %s70, %s71
    %p82 = scmp.eq.s32.totalorder %s15, 0
    %p83 = por %p81, %p82
    %p84 = scmp.ne.s32.totalorder %s70, %s71
    %p85 = scmp.eq.s32.totalorder %s16, 1
    %p86 = por %p84, %p85
    %p88 = scmp.ne.s32.totalorder %s71, %s87
    %p89 = scmp.eq.s32.totalorder %s16, 0
    %p90 = por %p88, %p89
    %s91 = ssub.s32 %s10, %s17
    %p92 = scmp.eq.s32.totalorder %s91, 0
    %s94 = sadd.s32 %s93, 1
    %s95 = scalar_select %p92, %s93, %s94
    %p98 = pneg %p92
    %p99 = scmp.eq.s32.totalorder %s10, 1
    %p100 = por %p98, %p99
    %p101 = scmp.ne.s32.totalorder %s93, %s96
    %p102 = scmp.eq.s32.totalorder %s10, 0
    %p103 = por %p101, %p102
    %p104 = scmp.ne.s32.totalorder %s93, %s96
    %p105 = scmp.eq.s32.totalorder %s15, 1
    %p106 = por %p104, %p105
    %p107 = scmp.ne.s32.totalorder %s96, %s97
    %p108 = scmp.eq.s32.totalorder %s15, 0
    %p109 = por %p107, %p108
    %p110 = scmp.ne.s32.totalorder %s96, %s97
    %p111 = scmp.eq.s32.totalorder %s16, 1
    %p112 = por %p110, %p111
    %p114 = scmp.ne.s32.totalorder %s97, %s113
    %p115 = scmp.eq.s32.totalorder %s16, 0
    %p116 = por %p114, %p115
    %p117 = scmp.le.s32.totalorder 1, %s10
    %p118 = scmp.lt.s32.totalorder %s10, 3
    %p119 = pnand %p117, %p118
    %p120 = pneg %p119
    // Predicated region
    $region9: #{extract_forward.2} parent=5 // pred_check
      _
    $region10: #{extract_forward.2} parent=5 // pred_check_branch
      %122 = sbr.rel (%p119) target = $region12
    $region11: #{extract_forward.2} parent=5 // pred_region
      %s123 = ssub.s32 %s10, 1
      // Predicated region
      $region13: #{extract_forward.2} parent=11 // pred_check
        %p124 = pneg %p57
      $region14: #{extract_forward.2} parent=11 // pred_check_branch
        %126 = sbr.rel (%p124) target = $region16
      $region15: #{extract_forward.2} parent=11 // pred_region
        _
      $region16: #{extract_forward.2} parent=11 // pred_fallthru
        _
    $region12: #{extract_forward.2} parent=5 // pred_fallthru
      _
    %p127 = scmp.lt.s32.totalorder %s10, 2
    // Predicated region
    $region17: #{extract_forward.2} parent=5 // pred_check
      %p128 = pneg %p127
    $region18: #{extract_forward.2} parent=5 // pred_check_branch
      %130 = sbr.rel (%p128) target = $region20
    $region19: #{extract_forward.2} parent=5 // pred_region
      // Predicated region
      $region21: #{extract_forward.2} parent=19 // pred_check
        %p131 = pneg %p30
      $region22: #{extract_forward.2} parent=19 // pred_check_branch
        %133 = sbr.rel (%p131) target = $region24
      $region23: #{extract_forward.2} parent=19 // pred_region
        %s134 = smul.u32 32, %s10
        %p135 = scmp.lt.s32.totalorder %s134, 63
        %s136 = scalar_select %p135, %s134, 63
        %s137 = smul.addr %s136, 8
        %s138 = scalar_lea.vmem %s0, %s137
        %s139 = smul.u32 32, %s10
      $region24: #{extract_forward.2} parent=19 // pred_fallthru
        _
    $region20: #{extract_forward.2} parent=5 // pred_fallthru
      _
    %p140 = scmp.le.s32.totalorder 1, %s10
    %p141 = scmp.lt.s32.totalorder %s10, 3
    %p142 = pnand %p140, %p141
    %p143 = pneg %p142
    // Predicated region
    $region25: #{extract_forward.2} parent=5 // pred_check
      _
    $region26: #{extract_forward.2} parent=5 // pred_check_branch
      %145 = sbr.rel (%p142) target = $region28
    $region27: #{extract_forward.2} parent=5 // pred_region
      %s146 = ssub.s32 %s10, 1
      %s147 = smul.u32 32, %s15
      %p148 = scmp.lt.s32.totalorder %s147, 63
      %s149 = scalar_select %p148, %s147, 63
      %s150 = smul.addr %s149, 8
      %s151 = scalar_lea.vmem %s0, %s150
      %p152 = pneg %p36
      %p153 = pneg %p33
      %p154 = pneg %p57
      %p155 = pneg %p54
      %p156 = pneg %p83
      %p157 = pneg %p80
      %s158 = smul.u32 32, %s15
      %p159 = scmp.lt.s32.totalorder %s158, 63
      %s160 = scalar_select %p159, %s158, 63
      %s161 = smul.addr %s160, 8
      %s162 = scalar_lea.vmem %s2, %s161
      %p163 = pneg %p109
      %p164 = pneg %p106
      %p165 = scmp.lt.s32.totalorder %s15, 1
      %s166 = scalar_select %p165, %s15, 1
      %s167 = smul.addr %s166, 2
      %s168 = scalar_lea.vmem %s3, %s167
      %s169 = smul.u32 32, %s15
      %p170 = scmp.lt.s32.totalorder %s169, 63
      %s171 = scalar_select %p170, %s169, 63
      %s172 = smul.addr %s171, 8
      %s173 = scalar_lea.vmem %s0, %s172
      %s174 = smul.u32 32, %s15
      %s175 = smul.u32 32, %s15
      %p176 = scmp.lt.s32.totalorder %s175, 63
      %s177 = scalar_select %p176, %s175, 63
      %s178 = smul.addr %s177, 8
      %s179 = scalar_lea.vmem %s2, %s178
      %s180 = smul.u32 32, %s15
      %p181 = scmp.lt.s32.totalorder %s15, 1
      %s182 = scalar_select %p181, %s15, 1
      %s183 = smul.addr %s182, 2
      %s184 = scalar_lea.vmem %s3, %s183
      %v185 = vld [vmem:[%s173] sm:$0xff]
      %v186 = vld [vmem:[%s173 + $0x8] sm:$0xff]
      %v187 = vld [vmem:[%s173 + $0x10] sm:$0xff]
      %v188 = vld [vmem:[%s173 + $0x18] sm:$0xff]
      %v189 = vld [vmem:[%s173 + $0x20] sm:$0xff]
      %v190 = vld [vmem:[%s173 + $0x28] sm:$0xff]
      %v191 = vld [vmem:[%s173 + $0x30] sm:$0xff]
      %v192 = vld [vmem:[%s173 + $0x38] sm:$0xff]
      %v193 = vld [vmem:[%s173 + $0x40] sm:$0xff]
      %v194 = vld [vmem:[%s173 + $0x48] sm:$0xff]
      %v195 = vld [vmem:[%s173 + $0x50] sm:$0xff]
      %v196 = vld [vmem:[%s173 + $0x58] sm:$0xff]
      %v197 = vld [vmem:[%s173 + $0x60] sm:$0xff]
      %v198 = vld [vmem:[%s173 + $0x68] sm:$0xff]
      %v199 = vld [vmem:[%s173 + $0x70] sm:$0xff]
      %v200 = vld [vmem:[%s173 + $0x78] sm:$0xff]
      %v201 = vld [vmem:[%s173 + $0x80] sm:$0xff]
      %v202 = vld [vmem:[%s173 + $0x88] sm:$0xff]
      %v203 = vld [vmem:[%s173 + $0x90] sm:$0xff]
      %v204 = vld [vmem:[%s173 + $0x98] sm:$0xff]
      %v205 = vld [vmem:[%s173 + $0xa0] sm:$0xff]
      %v206 = vld [vmem:[%s173 + $0xa8] sm:$0xff]
      %v207 = vld [vmem:[%s173 + $0xb0] sm:$0xff]
      %v208 = vld [vmem:[%s173 + $0xb8] sm:$0xff]
      %v209 = vld [vmem:[%s173 + $0xc0] sm:$0xff]
      %v210 = vld [vmem:[%s173 + $0xc8] sm:$0xff]
      %v211 = vld [vmem:[%s173 + $0xd0] sm:$0xff]
      %v212 = vld [vmem:[%s173 + $0xd8] sm:$0xff]
      %v213 = vld [vmem:[%s173 + $0xe0] sm:$0xff]
      %v214 = vld [vmem:[%s173 + $0xe8] sm:$0xff]
      %v215 = vld [vmem:[%s173 + $0xf0] sm:$0xff]
      %v216 = vld [vmem:[%s173 + $0xf8] sm:$0xff]
      %v217 = vld [vmem:[%s1] sm:$0xff]
      %v218 = vld [vmem:[%s1 + $0x8] sm:$0xff]
      %v219 = vld [vmem:[%s1 + $0x10] sm:$0xff]
      %v220 = vld [vmem:[%s1 + $0x18] sm:$0xff]
      %v221 = vld [vmem:[%s1 + $0x20] sm:$0xff]
      %v222 = vld [vmem:[%s1 + $0x28] sm:$0xff]
      %v223 = vld [vmem:[%s1 + $0x30] sm:$0xff]
      %v224 = vld [vmem:[%s1 + $0x38] sm:$0xff]
      %v225 = vld [vmem:[%s1 + $0x40] sm:$0xff]
      %v226 = vld [vmem:[%s1 + $0x48] sm:$0xff]
      %v227 = vld [vmem:[%s1 + $0x50] sm:$0xff]
      %v228 = vld [vmem:[%s1 + $0x58] sm:$0xff]
      %v229 = vld [vmem:[%s1 + $0x60] sm:$0xff]
      %v230 = vld [vmem:[%s1 + $0x68] sm:$0xff]
      %v231 = vld [vmem:[%s1 + $0x70] sm:$0xff]
      %v232 = vld [vmem:[%s1 + $0x78] sm:$0xff]
      %233 = vmatprep.subr.mxu0 0.0
      %234 = vmatpush1.msra.mxu0 %v232
      %235 = vmatprep.subr.mxu0 0.0
      %236 = vmatpush1.msra.mxu0 %v231
      %237 = vmatprep.subr.mxu0 0.0
      %238 = vmatpush1.msra.mxu0 %v230
      %239 = vmatprep.subr.mxu0 0.0
      %240 = vmatpush1.msra.mxu0 %v229
      %241 = vmatprep.subr.mxu0 0.0
      %242 = vmatpush1.msra.mxu0 %v228
      %243 = vmatprep.subr.mxu0 0.0
      %244 = vmatpush1.msra.mxu0 %v227
      %245 = vmatprep.subr.mxu0 0.0
      %246 = vmatpush1.msra.mxu0 %v226
      %247 = vmatprep.subr.mxu0 0.0
      %248 = vmatpush1.msra.mxu0 %v225
      %249 = vmatprep.subr.mxu0 0.0
      %250 = vmatpush1.msra.mxu0 %v224
      %251 = vmatprep.subr.mxu0 0.0
      %252 = vmatpush1.msra.mxu0 %v223
      %253 = vmatprep.subr.mxu0 0.0
      %254 = vmatpush1.msra.mxu0 %v222
      %255 = vmatprep.subr.mxu0 0.0
      %256 = vmatpush1.msra.mxu0 %v221
      %257 = vmatprep.subr.mxu0 0.0
      %258 = vmatpush1.msra.mxu0 %v220
      %259 = vmatprep.subr.mxu0 0.0
      %260 = vmatpush1.msra.mxu0 %v219
      %261 = vmatprep.subr.mxu0 0.0
      %262 = vmatpush1.msra.mxu0 %v218
      %263 = vmatprep.subr.mxu0 0.0
      %264 = vmatpush1.msra.mxu0 %v217
      %265 = vmatprep.subr.mxu0 0.0
      %266 = vmatpush2.msra.mxu0 0.0
      %267 = vmatprep.subr.mxu0 0.0
      %268 = vmatpush2.msra.mxu0 0.0
      %269 = vmatprep.subr.mxu0 0.0
      %270 = vmatpush2.msra.mxu0 0.0
      %271 = vmatprep.subr.mxu0 0.0
      %272 = vmatpush2.msra.mxu0 0.0
      %273 = vmatprep.subr.mxu0 0.0
      %274 = vmatpush2.msra.mxu0 0.0
      %275 = vmatprep.subr.mxu0 0.0
      %276 = vmatpush2.msra.mxu0 0.0
      %277 = vmatprep.subr.mxu0 0.0
      %278 = vmatpush2.msra.mxu0 0.0
      %279 = vmatprep.subr.mxu0 0.0
      %280 = vmatpush2.msra.mxu0 0.0
      %281 = vmatprep.subr.mxu0 0.0
      %282 = vmatpush2.msra.mxu0 0.0
      %283 = vmatprep.subr.mxu0 0.0
      %284 = vmatpush2.msra.mxu0 0.0
      %285 = vmatprep.subr.mxu0 0.0
      %286 = vmatpush2.msra.mxu0 0.0
      %287 = vmatprep.subr.mxu0 0.0
      %288 = vmatpush2.msra.mxu0 0.0
      %289 = vmatprep.subr.mxu0 0.0
      %290 = vmatpush2.msra.mxu0 0.0
      %291 = vmatprep.subr.mxu0 0.0
      %292 = vmatpush2.msra.mxu0 0.0
      %293 = vmatprep.subr.mxu0 0.0
      %294 = vmatpush2.msra.mxu0 0.0
      %295 = vmatprep.subr.mxu0 0.0
      %296 = vmatpush2.msra.mxu0 0.0
      %297 = vmatprep.mubr.f32.mxu0 0.0
      %298 = vmatmul.mubr.f32.gmra.mxu0 %v185
      %v299 = vpop.f32.mrf.mxu0
      %v300 = vadd.f32 0.0, %v299
      %v301 = vpop.f32.mrf.mxu0
      %302 = vmatprep.mubr.f32.mxu0 0.0
      %303 = vmatmul.mubr.f32.gmra.mxu0 %v186
      %v304 = vpop.f32.mrf.mxu0
      %v305 = vadd.f32 0.0, %v304
      %v306 = vpop.f32.mrf.mxu0
      %307 = vmatprep.mubr.f32.mxu0 0.0
      %308 = vmatmul.mubr.f32.gmra.mxu0 %v187
      %v309 = vpop.f32.mrf.mxu0
      %v310 = vadd.f32 0.0, %v309
      %v311 = vpop.f32.mrf.mxu0
      %312 = vmatprep.mubr.f32.mxu0 0.0
      %313 = vmatmul.mubr.f32.gmra.mxu0 %v188
      %v314 = vpop.f32.mrf.mxu0
      %v315 = vadd.f32 0.0, %v314
      %v316 = vpop.f32.mrf.mxu0
      %317 = vmatprep.mubr.f32.mxu0 0.0
      %318 = vmatmul.mubr.f32.gmra.mxu0 %v189
      %v319 = vpop.f32.mrf.mxu0
      %v320 = vadd.f32 0.0, %v319
      %v321 = vpop.f32.mrf.mxu0
      %322 = vmatprep.mubr.f32.mxu0 0.0
      %323 = vmatmul.mubr.f32.gmra.mxu0 %v190
      %v324 = vpop.f32.mrf.mxu0
      %v325 = vadd.f32 0.0, %v324
      %v326 = vpop.f32.mrf.mxu0
      %327 = vmatprep.mubr.f32.mxu0 0.0
      %328 = vmatmul.mubr.f32.gmra.mxu0 %v191
      %v329 = vpop.f32.mrf.mxu0
      %v330 = vadd.f32 0.0, %v329
      %v331 = vpop.f32.mrf.mxu0
      %332 = vmatprep.mubr.f32.mxu0 0.0
      %333 = vmatmul.mubr.f32.gmra.mxu0 %v192
      %v334 = vpop.f32.mrf.mxu0
      %v335 = vadd.f32 0.0, %v334
      %v336 = vpop.f32.mrf.mxu0
      %337 = vmatprep.mubr.f32.mxu0 0.0
      %338 = vmatmul.mubr.f32.gmra.mxu0 %v193
      %v339 = vpop.f32.mrf.mxu0
      %v340 = vadd.f32 0.0, %v339
      %v341 = vpop.f32.mrf.mxu0
      %342 = vmatprep.mubr.f32.mxu0 0.0
      %343 = vmatmul.mubr.f32.gmra.mxu0 %v194
      %v344 = vpop.f32.mrf.mxu0
      %v345 = vadd.f32 0.0, %v344
      %v346 = vpop.f32.mrf.mxu0
      %347 = vmatprep.mubr.f32.mxu0 0.0
      %348 = vmatmul.mubr.f32.gmra.mxu0 %v195
      %v349 = vpop.f32.mrf.mxu0
      %v350 = vadd.f32 0.0, %v349
      %v351 = vpop.f32.mrf.mxu0
      %352 = vmatprep.mubr.f32.mxu0 0.0
      %353 = vmatmul.mubr.f32.gmra.mxu0 %v196
      %v354 = vpop.f32.mrf.mxu0
      %v355 = vadd.f32 0.0, %v354
      %v356 = vpop.f32.mrf.mxu0
      %357 = vmatprep.mubr.f32.mxu0 0.0
      %358 = vmatmul.mubr.f32.gmra.mxu0 %v197
      %v359 = vpop.f32.mrf.mxu0
      %v360 = vadd.f32 0.0, %v359
      %v361 = vpop.f32.mrf.mxu0
      %362 = vmatprep.mubr.f32.mxu0 0.0
      %363 = vmatmul.mubr.f32.gmra.mxu0 %v198
      %v364 = vpop.f32.mrf.mxu0
      %v365 = vadd.f32 0.0, %v364
      %v366 = vpop.f32.mrf.mxu0
      %367 = vmatprep.mubr.f32.mxu0 0.0
      %368 = vmatmul.mubr.f32.gmra.mxu0 %v199
      %v369 = vpop.f32.mrf.mxu0
      %v370 = vadd.f32 0.0, %v369
      %v371 = vpop.f32.mrf.mxu0
      %372 = vmatprep.mubr.f32.mxu0 0.0
      %373 = vmatmul.mubr.f32.gmra.mxu0 %v200
      %v374 = vpop.f32.mrf.mxu0
      %v375 = vadd.f32 0.0, %v374
      %v376 = vpop.f32.mrf.mxu0
      %377 = vmatprep.mubr.f32.mxu0 0.0
      %378 = vmatmul.mubr.f32.gmra.mxu0 %v201
      %v379 = vpop.f32.mrf.mxu0
      %v380 = vadd.f32 0.0, %v379
      %v381 = vpop.f32.mrf.mxu0
      %382 = vmatprep.mubr.f32.mxu0 0.0
      %383 = vmatmul.mubr.f32.gmra.mxu0 %v202
      %v384 = vpop.f32.mrf.mxu0
      %v385 = vadd.f32 0.0, %v384
      %v386 = vpop.f32.mrf.mxu0
      %387 = vmatprep.mubr.f32.mxu0 0.0
      %388 = vmatmul.mubr.f32.gmra.mxu0 %v203
      %v389 = vpop.f32.mrf.mxu0
      %v390 = vadd.f32 0.0, %v389
      %v391 = vpop.f32.mrf.mxu0
      %392 = vmatprep.mubr.f32.mxu0 0.0
      %393 = vmatmul.mubr.f32.gmra.mxu0 %v204
      %v394 = vpop.f32.mrf.mxu0
      %v395 = vadd.f32 0.0, %v394
      %v396 = vpop.f32.mrf.mxu0
      %397 = vmatprep.mubr.f32.mxu0 0.0
      %398 = vmatmul.mubr.f32.gmra.mxu0 %v205
      %v399 = vpop.f32.mrf.mxu0
      %v400 = vadd.f32 0.0, %v399
      %v401 = vpop.f32.mrf.mxu0
      %402 = vmatprep.mubr.f32.mxu0 0.0
      %403 = vmatmul.mubr.f32.gmra.mxu0 %v206
      %v404 = vpop.f32.mrf.mxu0
      %v405 = vadd.f32 0.0, %v404
      %v406 = vpop.f32.mrf.mxu0
      %407 = vmatprep.mubr.f32.mxu0 0.0
      %408 = vmatmul.mubr.f32.gmra.mxu0 %v207
      %v409 = vpop.f32.mrf.mxu0
      %v410 = vadd.f32 0.0, %v409
      %v411 = vpop.f32.mrf.mxu0
      %412 = vmatprep.mubr.f32.mxu0 0.0
      %413 = vmatmul.mubr.f32.gmra.mxu0 %v208
      %v414 = vpop.f32.mrf.mxu0
      %v415 = vadd.f32 0.0, %v414
      %v416 = vpop.f32.mrf.mxu0
      %417 = vmatprep.mubr.f32.mxu0 0.0
      %418 = vmatmul.mubr.f32.gmra.mxu0 %v209
      %v419 = vpop.f32.mrf.mxu0
      %v420 = vadd.f32 0.0, %v419
      %v421 = vpop.f32.mrf.mxu0
      %422 = vmatprep.mubr.f32.mxu0 0.0
      %423 = vmatmul.mubr.f32.gmra.mxu0 %v210
      %v424 = vpop.f32.mrf.mxu0
      %v425 = vadd.f32 0.0, %v424
      %v426 = vpop.f32.mrf.mxu0
      %427 = vmatprep.mubr.f32.mxu0 0.0
      %428 = vmatmul.mubr.f32.gmra.mxu0 %v211
      %v429 = vpop.f32.mrf.mxu0
      %v430 = vadd.f32 0.0, %v429
      %v431 = vpop.f32.mrf.mxu0
      %432 = vmatprep.mubr.f32.mxu0 0.0
      %433 = vmatmul.mubr.f32.gmra.mxu0 %v212
      %v434 = vpop.f32.mrf.mxu0
      %v435 = vadd.f32 0.0, %v434
      %v436 = vpop.f32.mrf.mxu0
      %437 = vmatprep.mubr.f32.mxu0 0.0
      %438 = vmatmul.mubr.f32.gmra.mxu0 %v213
      %v439 = vpop.f32.mrf.mxu0
      %v440 = vadd.f32 0.0, %v439
      %v441 = vpop.f32.mrf.mxu0
      %442 = vmatprep.mubr.f32.mxu0 0.0
      %443 = vmatmul.mubr.f32.gmra.mxu0 %v214
      %v444 = vpop.f32.mrf.mxu0
      %v445 = vadd.f32 0.0, %v444
      %v446 = vpop.f32.mrf.mxu0
      %447 = vmatprep.mubr.f32.mxu0 0.0
      %448 = vmatmul.mubr.f32.gmra.mxu0 %v215
      %v449 = vpop.f32.mrf.mxu0
      %v450 = vadd.f32 0.0, %v449
      %v451 = vpop.f32.mrf.mxu0
      %452 = vmatprep.mubr.f32.mxu0 0.0
      %453 = vmatmul.mubr.f32.gmra.mxu0 %v216
      %v454 = vpop.f32.mrf.mxu0
      %v455 = vadd.f32 0.0, %v454
      %v456 = vpop.f32.mrf.mxu0
      %457 = vdwg.mxu0
      %458 = vst [vmem:[%s179] sm:$0xff] %v300
      %459 = vst [vmem:[%s179 + $0x8] sm:$0xff] %v305
      %460 = vst [vmem:[%s179 + $0x10] sm:$0xff] %v310
      %461 = vst [vmem:[%s179 + $0x18] sm:$0xff] %v315
      %462 = vst [vmem:[%s179 + $0x20] sm:$0xff] %v320
      %463 = vst [vmem:[%s179 + $0x28] sm:$0xff] %v325
      %464 = vst [vmem:[%s179 + $0x30] sm:$0xff] %v330
      %465 = vst [vmem:[%s179 + $0x38] sm:$0xff] %v335
      %466 = vst [vmem:[%s179 + $0x40] sm:$0xff] %v340
      %467 = vst [vmem:[%s179 + $0x48] sm:$0xff] %v345
      %468 = vst [vmem:[%s179 + $0x50] sm:$0xff] %v350
      %469 = vst [vmem:[%s179 + $0x58] sm:$0xff] %v355
      %470 = vst [vmem:[%s179 + $0x60] sm:$0xff] %v360
      %471 = vst [vmem:[%s179 + $0x68] sm:$0xff] %v365
      %472 = vst [vmem:[%s179 + $0x70] sm:$0xff] %v370
      %473 = vst [vmem:[%s179 + $0x78] sm:$0xff] %v375
      %474 = vst [vmem:[%s179 + $0x80] sm:$0xff] %v380
      %475 = vst [vmem:[%s179 + $0x88] sm:$0xff] %v385
      %476 = vst [vmem:[%s179 + $0x90] sm:$0xff] %v390
      %477 = vst [vmem:[%s179 + $0x98] sm:$0xff] %v395
      %478 = vst [vmem:[%s179 + $0xa0] sm:$0xff] %v400
      %479 = vst [vmem:[%s179 + $0xa8] sm:$0xff] %v405
      %480 = vst [vmem:[%s179 + $0xb0] sm:$0xff] %v410
      %481 = vst [vmem:[%s179 + $0xb8] sm:$0xff] %v415
      %482 = vst [vmem:[%s179 + $0xc0] sm:$0xff] %v420
      %483 = vst [vmem:[%s179 + $0xc8] sm:$0xff] %v425
      %484 = vst [vmem:[%s179 + $0xd0] sm:$0xff] %v430
      %485 = vst [vmem:[%s179 + $0xd8] sm:$0xff] %v435
      %486 = vst [vmem:[%s179 + $0xe0] sm:$0xff] %v440
      %487 = vst [vmem:[%s179 + $0xe8] sm:$0xff] %v445
      %488 = vst [vmem:[%s179 + $0xf0] sm:$0xff] %v450
      %489 = vst [vmem:[%s179 + $0xf8] sm:$0xff] %v455
      %v490 = vadd.f32 %v300, %v305
      %v491 = vadd.f32 %v490, %v310
      %v492 = vadd.f32 %v491, %v315
      %v493 = vadd.f32 %v492, %v320
      %v494 = vadd.f32 %v493, %v325
      %v495 = vadd.f32 %v494, %v330
      %v496 = vadd.f32 %v495, %v335
      %v497 = vadd.f32 %v496, %v340
      %v498 = vadd.f32 %v497, %v345
      %v499 = vadd.f32 %v498, %v350
      %v500 = vadd.f32 %v499, %v355
      %v501 = vadd.f32 %v500, %v360
      %v502 = vadd.f32 %v501, %v365
      %v503 = vadd.f32 %v502, %v370
      %v504 = vadd.f32 %v503, %v375
      %v505 = vadd.f32 %v504, %v380
      %v506 = vadd.f32 %v505, %v385
      %v507 = vadd.f32 %v506, %v390
      %v508 = vadd.f32 %v507, %v395
      %v509 = vadd.f32 %v508, %v400
      %v510 = vadd.f32 %v509, %v405
      %v511 = vadd.f32 %v510, %v410
      %v512 = vadd.f32 %v511, %v415
      %v513 = vadd.f32 %v512, %v420
      %v514 = vadd.f32 %v513, %v425
      %v515 = vadd.f32 %v514, %v430
      %v516 = vadd.f32 %v515, %v435
      %v517 = vadd.f32 %v516, %v440
      %v518 = vadd.f32 %v517, %v445
      %v519 = vadd.f32 %v518, %v450
      %v520 = vadd.f32 %v519, %v455
      %v521 = vrot.slane %v520, 4
      %v522 = vadd.f32 %v520, %v521
      %v523 = vrot.slane %v522, 2
      %v524 = vadd.f32 %v522, %v523
      %v525 = vrot.slane %v524, 1
      %v526 = vadd.f32 %v524, %v525
      %v527 = vmul.f32 %v300, %v300
      %v528 = vmul.f32 %v305, %v305
      %v529 = vmul.f32 %v310, %v310
      %v530 = vmul.f32 %v315, %v315
      %v531 = vmul.f32 %v320, %v320
      %v532 = vmul.f32 %v325, %v325
      %v533 = vmul.f32 %v330, %v330
      %v534 = vmul.f32 %v335, %v335
      %v535 = vmul.f32 %v340, %v340
      %v536 = vmul.f32 %v345, %v345
      %v537 = vmul.f32 %v350, %v350
      %v538 = vmul.f32 %v355, %v355
      %v539 = vmul.f32 %v360, %v360
      %v540 = vmul.f32 %v365, %v365
      %v541 = vmul.f32 %v370, %v370
      %v542 = vmul.f32 %v375, %v375
      %v543 = vmul.f32 %v380, %v380
      %v544 = vmul.f32 %v385, %v385
      %v545 = vmul.f32 %v390, %v390
      %v546 = vmul.f32 %v395, %v395
      %v547 = vmul.f32 %v400, %v400
      %v548 = vmul.f32 %v405, %v405
      %v549 = vmul.f32 %v410, %v410
      %v550 = vmul.f32 %v415, %v415
      %v551 = vmul.f32 %v420, %v420
      %v552 = vmul.f32 %v425, %v425
      %v553 = vmul.f32 %v430, %v430
      %v554 = vmul.f32 %v435, %v435
      %v555 = vmul.f32 %v440, %v440
      %v556 = vmul.f32 %v445, %v445
      %v557 = vmul.f32 %v450, %v450
      %v558 = vmul.f32 %v455, %v455
      %v559 = vadd.f32 %v527, %v528
      %v560 = vadd.f32 %v559, %v529
      %v561 = vadd.f32 %v560, %v530
      %v562 = vadd.f32 %v561, %v531
      %v563 = vadd.f32 %v562, %v532
      %v564 = vadd.f32 %v563, %v533
      %v565 = vadd.f32 %v564, %v534
      %v566 = vadd.f32 %v565, %v535
      %v567 = vadd.f32 %v566, %v536
      %v568 = vadd.f32 %v567, %v537
      %v569 = vadd.f32 %v568, %v538
      %v570 = vadd.f32 %v569, %v539
      %v571 = vadd.f32 %v570, %v540
      %v572 = vadd.f32 %v571, %v541
      %v573 = vadd.f32 %v572, %v542
      %v574 = vadd.f32 %v573, %v543
      %v575 = vadd.f32 %v574, %v544
      %v576 = vadd.f32 %v575, %v545
      %v577 = vadd.f32 %v576, %v546
      %v578 = vadd.f32 %v577, %v547
      %v579 = vadd.f32 %v578, %v548
      %v580 = vadd.f32 %v579, %v549
      %v581 = vadd.f32 %v580, %v550
      %v582 = vadd.f32 %v581, %v551
      %v583 = vadd.f32 %v582, %v552
      %v584 = vadd.f32 %v583, %v553
      %v585 = vadd.f32 %v584, %v554
      %v586 = vadd.f32 %v585, %v555
      %v587 = vadd.f32 %v586, %v556
      %v588 = vadd.f32 %v587, %v557
      %v589 = vadd.f32 %v588, %v558
      %v590 = vrot.slane %v589, 4
      %v591 = vadd.f32 %v589, %v590
      %v592 = vrot.slane %v591, 2
      %v593 = vadd.f32 %v591, %v592
      %v594 = vrot.slane %v593, 1
      %v595 = vadd.f32 %v593, %v594
      %vm596 = vcmask 1040384
      %v597 = vsel %vm596, %v526, %v595
      %598 = vst [vmem:[%s184] sm:$0x3] %v597
      %s599 = smul.u32 32, %s15
      %p600 = scmp.lt.s32.totalorder %s599, 63
      %s601 = scalar_select %p600, %s599, 63
      %s602 = smul.addr %s601, 8
      %s603 = scalar_lea.vmem %s2, %s602
      %p604 = scmp.lt.s32.totalorder %s15, 1
      %s605 = scalar_select %p604, %s15, 1
      %s606 = smul.addr %s605, 2
      %s607 = scalar_lea.vmem %s3, %s606
      // Predicated region
      $region29: #{extract_forward.2} parent=27 // pred_check
        %p608 = pneg %p80
      $region30: #{extract_forward.2} parent=27 // pred_check_branch
        %610 = sbr.rel (%p608) target = $region32
      $region31: #{extract_forward.2} parent=27 // pred_region
        %s611 = smul.u32 32, %s15
      $region32: #{extract_forward.2} parent=27 // pred_fallthru
        _
      // Predicated region
      $region33: #{extract_forward.2} parent=27 // pred_check
        %p612 = pneg %p106
      $region34: #{extract_forward.2} parent=27 // pred_check_branch
        %614 = sbr.rel (%p612) target = $region36
      $region35: #{extract_forward.2} parent=27 // pred_region
        _
      $region36: #{extract_forward.2} parent=27 // pred_fallthru
        _
    $region28: #{extract_forward.2} parent=5 // pred_fallthru
      _
    %p615 = scmp.le.s32.totalorder 2, %s10
    // Predicated region
    $region37: #{extract_forward.2} parent=5 // pred_check
      %p616 = pneg %p615
    $region38: #{extract_forward.2} parent=5 // pred_check_branch
      %618 = sbr.rel (%p616) target = $region40
    $region39: #{extract_forward.2} parent=5 // pred_region
      %s619 = ssub.s32 %s10, 2
      // Predicated region
      $region41: #{extract_forward.2} parent=39 // pred_check
        %p620 = pneg %p86
      $region42: #{extract_forward.2} parent=39 // pred_check_branch
        %622 = sbr.rel (%p620) target = $region44
      $region43: #{extract_forward.2} parent=39 // pred_region
        %s623 = smul.u32 32, %s16
        %p624 = scmp.lt.s32.totalorder %s623, 63
        %s625 = scalar_select %p624, %s623, 63
        %s626 = smul.addr %s625, 8
        %s627 = scalar_lea.vmem %s2, %s626
      $region44: #{extract_forward.2} parent=39 // pred_fallthru
        _
      // Predicated region
      $region45: #{extract_forward.2} parent=39 // pred_check
        %p628 = pneg %p112
      $region46: #{extract_forward.2} parent=39 // pred_check_branch
        %630 = sbr.rel (%p628) target = $region48
      $region47: #{extract_forward.2} parent=39 // pred_region
        %p631 = scmp.lt.s32.totalorder %s16, 1
        %s632 = scalar_select %p631, %s16, 1
        %s633 = smul.addr %s632, 2
        %s634 = scalar_lea.vmem %s3, %s633
      $region48: #{extract_forward.2} parent=39 // pred_fallthru
        _
    $region40: #{extract_forward.2} parent=5 // pred_fallthru
      _
  $region6: #{extract_forward.2} parent=0 // loop_footer
    %s14 = sadd.s32 1, %s10
  $region7: #{extract_forward.2} parent=0 // loop_footer_branch
    %9 = sbr.rel target = $region3
  $region8: #{extract_forward.2} parent=0 // loop_exit
    _

// kernel: extract_forward.3
$region0: #{extract_forward.3}
  #allocation0 [shape = 'u32[]', space=smem, size = 0x4, offset = 0x4, fixed_abs, tag = 'smem constant byte address 0x4 - core index']
  #allocation1 [shape = 'u32[144,128]{1,0:T(1,128)}', space=vmem, size = 0x12000, scoped, tag = 'internal scratch']
  %s0 = inlined_call_operand.vmem [shape: f32[512,128], index: 0, kind: input, shape index: {}]
  %s1 = inlined_call_operand.vmem [shape: f32[1,128], index: 1, kind: input, shape index: {}]
  %s2 = inlined_call_operand.vmem [shape: f32[1,128], index: 2, kind: input, shape index: {}]
  %s3 = inlined_call_operand.hbm [shape: f32[512,128], index: 3, kind: output, shape index: {}]
  %s4 = sld [smem:[#allocation0]]
  $region45: #{extract_forward.3} parent=0
    _
  %s6 = ssub.s32 1, %s4
  %s7 = scalar_select 0, %s6, %s4
  $region1: #{extract_forward.3} parent=0
    #allocation2 [shape = 'u8[262144]{0}', space=vmem, size = 0x40000, scoped, tag = 'output window, operand 0']
    #allocation3 [shape = 's32[2]{0}', space=sflag, size = 0x8, scoped, tag = 'scoped memory for extract_forward.3']
    %8 = vsyncpa [#allocation3], 0
    %s9 = scalar_lea.sflag [#allocation3], 1
    %10 = vsyncpa %s9, 0
    loop: start=0, step=1, limit=4
    $region2: #{extract_forward.3} parent=1 // loop_pre_header
      _
    $region3: #{extract_forward.3} parent=1 // loop_header
      %s12 = sphi 0, %s16
      %p13 = scmp.ge.s32.totalorder %s12, 4
      %s22 = sphi 0, %s24
      %s25 = sphi 0, %s22
      %s26 = sphi 0, %s25
      %s42 = sphi 0, %s26
      %s46 = sphi 0, %s46
      %s48 = sphi 0, %s46
      %s49 = sphi 0, %s48
      %s63 = sphi 0, %s49
      %s67 = sphi 0, %s67
      %s69 = sphi 0, %s67
      %s70 = sphi 0, %s69
      %s84 = sphi 0, %s70
      %s90 = sphi 0, %s92
      %s93 = sphi 0, %s90
      %s94 = sphi 0, %s93
      %s110 = sphi 0, %s94
    $region4: #{extract_forward.3} parent=1 // loop_header_branch
      %15 = sbr.rel (%p13) target = $region8
    $region5: #{extract_forward.3} parent=1 // loop_body
      %s17 = ssub.s32 %s12, 1
      %s18 = ssub.s32 %s12, 2
      %s19 = sadd.s32 %s12, 1
      %s20 = ssub.s32 %s12, %s19
      %p21 = scmp.eq.s32.totalorder %s20, 0
      %s23 = sadd.s32 %s22, 1
      %s24 = scalar_select %p21, %s22, %s23
      %p27 = pneg %p21
      %p28 = scmp.eq.s32.totalorder %s12, 1
      %p29 = por %p27, %p28
      %p30 = scmp.ne.s32.totalorder %s22, %s25
      %p31 = scmp.eq.s32.totalorder %s12, 0
      %p32 = por %p30, %p31
      %p33 = scmp.ne.s32.totalorder %s22, %s25
      %p34 = scmp.eq.s32.totalorder %s17, 1
      %p35 = por %p33, %p34
      %p36 = scmp.ne.s32.totalorder %s25, %s26
      %p37 = scmp.eq.s32.totalorder %s17, 0
      %p38 = por %p36, %p37
      %p39 = scmp.ne.s32.totalorder %s25, %s26
      %p40 = scmp.eq.s32.totalorder %s18, 1
      %p41 = por %p39, %p40
      %p43 = scmp.ne.s32.totalorder %s26, %s42
      %p44 = scmp.eq.s32.totalorder %s18, 0
      %p45 = por %p43, %p44
      %s47 = sadd.s32 %s46, 1
      %p50 = scmp.eq.s32.totalorder %s12, 1
      %p51 = scmp.ne.s32.totalorder %s46, %s48
      %p52 = scmp.eq.s32.totalorder %s12, 0
      %p53 = por %p51, %p52
      %p54 = scmp.ne.s32.totalorder %s46, %s48
      %p55 = scmp.eq.s32.totalorder %s17, 1
      %p56 = por %p54, %p55
      %p57 = scmp.ne.s32.totalorder %s48, %s49
      %p58 = scmp.eq.s32.totalorder %s17, 0
      %p59 = por %p57, %p58
      %p60 = scmp.ne.s32.totalorder %s48, %s49
      %p61 = scmp.eq.s32.totalorder %s18, 1
      %p62 = por %p60, %p61
      %p64 = scmp.ne.s32.totalorder %s49, %s63
      %p65 = scmp.eq.s32.totalorder %s18, 0
      %p66 = por %p64, %p65
      %s68 = sadd.s32 %s67, 1
      %p71 = scmp.eq.s32.totalorder %s12, 1
      %p72 = scmp.ne.s32.totalorder %s67, %s69
      %p73 = scmp.eq.s32.totalorder %s12, 0
      %p74 = por %p72, %p73
      %p75 = scmp.ne.s32.totalorder %s67, %s69
      %p76 = scmp.eq.s32.totalorder %s17, 1
      %p77 = por %p75, %p76
      %p78 = scmp.ne.s32.totalorder %s69, %s70
      %p79 = scmp.eq.s32.totalorder %s17, 0
      %p80 = por %p78, %p79
      %p81 = scmp.ne.s32.totalorder %s69, %s70
      %p82 = scmp.eq.s32.totalorder %s18, 1
      %p83 = por %p81, %p82
      %p85 = scmp.ne.s32.totalorder %s70, %s84
      %p86 = scmp.eq.s32.totalorder %s18, 0
      %p87 = por %p85, %p86
      %s88 = ssub.s32 %s12, %s19
      %p89 = scmp.eq.s32.totalorder %s88, 0
      %s91 = sadd.s32 %s90, 1
      %s92 = scalar_select %p89, %s90, %s91
      %p95 = pneg %p89
      %p96 = scmp.eq.s32.totalorder %s12, 1
      %p97 = por %p95, %p96
      %p98 = scmp.ne.s32.totalorder %s90, %s93
      %p99 = scmp.eq.s32.totalorder %s12, 0
      %p100 = por %p98, %p99
      %p101 = scmp.ne.s32.totalorder %s90, %s93
      %p102 = scmp.eq.s32.totalorder %s17, 1
      %p103 = por %p101, %p102
      %p104 = scmp.ne.s32.totalorder %s93, %s94
      %p105 = scmp.eq.s32.totalorder %s17, 0
      %p106 = por %p104, %p105
      %p107 = scmp.ne.s32.totalorder %s93, %s94
      %p108 = scmp.eq.s32.totalorder %s18, 1
      %p109 = por %p107, %p108
      %p111 = scmp.ne.s32.totalorder %s94, %s110
      %p112 = scmp.eq.s32.totalorder %s18, 0
      %p113 = por %p111, %p112
      %p114 = scmp.le.s32.totalorder 1, %s12
      %p115 = scmp.lt.s32.totalorder %s12, 3
      %p116 = pnand %p114, %p115
      %p117 = pneg %p116
      // Predicated region
      $region9: #{extract_forward.3} parent=5 // pred_check
        _
      $region10: #{extract_forward.3} parent=5 // pred_check_branch
        %119 = sbr.rel (%p116) target = $region12
      $region11: #{extract_forward.3} parent=5 // pred_region
        %s120 = ssub.s32 %s12, 1
        // Predicated region
        $region13: #{extract_forward.3} parent=11 // pred_check
          %p121 = pneg %p59
        $region14: #{extract_forward.3} parent=11 // pred_check_branch
          %123 = sbr.rel (%p121) target = $region16
        $region15: #{extract_forward.3} parent=11 // pred_region
          _
        $region16: #{extract_forward.3} parent=11 // pred_fallthru
          _
        // Predicated region
        $region17: #{extract_forward.3} parent=11 // pred_check
          %p124 = pneg %p80
        $region18: #{extract_forward.3} parent=11 // pred_check_branch
          %126 = sbr.rel (%p124) target = $region20
        $region19: #{extract_forward.3} parent=11 // pred_region
          _
        $region20: #{extract_forward.3} parent=11 // pred_fallthru
          _
      $region12: #{extract_forward.3} parent=5 // pred_fallthru
        _
      %p127 = scmp.lt.s32.totalorder %s12, 2
      // Predicated region
      $region21: #{extract_forward.3} parent=5 // pred_check
        %p128 = pneg %p127
      $region22: #{extract_forward.3} parent=5 // pred_check_branch
        %130 = sbr.rel (%p128) target = $region24
      $region23: #{extract_forward.3} parent=5 // pred_region
        // Predicated region
        $region25: #{extract_forward.3} parent=23 // pred_check
          %p131 = pneg %p32
        $region26: #{extract_forward.3} parent=23 // pred_check_branch
          %133 = sbr.rel (%p131) target = $region28
        $region27: #{extract_forward.3} parent=23 // pred_region
          %s134 = smul.u32 32, %s12
          %p135 = scmp.lt.s32.totalorder %s134, 63
          %s136 = scalar_select %p135, %s134, 63
          %s137 = smul.addr %s136, 8
          %s138 = scalar_lea.vmem %s0, %s137
          %s139 = smul.u32 32, %s12
        $region28: #{extract_forward.3} parent=23 // pred_fallthru
          _
      $region24: #{extract_forward.3} parent=5 // pred_fallthru
        _
      %p140 = scmp.le.s32.totalorder 1, %s12
      %p141 = scmp.lt.s32.totalorder %s12, 3
      %p142 = pnand %p140, %p141
      %p143 = pneg %p142
      // Predicated region
      $region29: #{extract_forward.3} parent=5 // pred_check
        _
      $region30: #{extract_forward.3} parent=5 // pred_check_branch
        %145 = sbr.rel (%p142) target = $region32
      $region31: #{extract_forward.3} parent=5 // pred_region
        %s146 = ssub.s32 %s12, 1
        %s147 = smul.u32 32, %s17
        %p148 = scmp.lt.s32.totalorder %s147, 63
        %s149 = scalar_select %p148, %s147, 63
        %s150 = smul.addr %s149, 8
        %s151 = scalar_lea.vmem %s0, %s150
        %p152 = pneg %p38
        %p153 = pneg %p35
        %p154 = pneg %p59
        %p155 = pneg %p56
        %p156 = pneg %p80
        %p157 = pneg %p77
        %p158 = pneg %p106
        %p159 = pneg %p103
        %s160 = sand.u32 %s93, 1
        %s161 = scalar_lea.sflag [#allocation3], %s160
        %s162 = sand.u32 %s93, 1
        %s163 = smul.addr %s162, 256
        %s164 = scalar_lea.vmem [#allocation2], %s163
        %s165 = smul.u32 32, %s17
        %p166 = scmp.lt.s32.totalorder %s165, 63
        %s167 = scalar_select %p166, %s165, 63
        %s168 = smul.addr %s167, 8
        %s169 = scalar_lea.vmem %s0, %s168
        %s170 = smul.u32 32, %s17
        %s171 = smul.u32 32, %s17
        %v172 = vld [vmem:[%s169] sm:$0xff]
        %v173 = vld [vmem:[%s169 + $0x8] sm:$0xff]
        %v174 = vld [vmem:[%s169 + $0x10] sm:$0xff]
        %v175 = vld [vmem:[%s169 + $0x18] sm:$0xff]
        %v176 = vld [vmem:[%s169 + $0x20] sm:$0xff]
        %v177 = vld [vmem:[%s169 + $0x28] sm:$0xff]
        %v178 = vld [vmem:[%s169 + $0x30] sm:$0xff]
        %v179 = vld [vmem:[%s169 + $0x38] sm:$0xff]
        %v180 = vld [vmem:[%s169 + $0x40] sm:$0xff]
        %v181 = vld [vmem:[%s169 + $0x48] sm:$0xff]
        %v182 = vld [vmem:[%s169 + $0x50] sm:$0xff]
        %v183 = vld [vmem:[%s169 + $0x58] sm:$0xff]
        %v184 = vld [vmem:[%s169 + $0x60] sm:$0xff]
        %v185 = vld [vmem:[%s169 + $0x68] sm:$0xff]
        %v186 = vld [vmem:[%s169 + $0x70] sm:$0xff]
        %v187 = vld [vmem:[%s169 + $0x78] sm:$0xff]
        %v188 = vld [vmem:[%s169 + $0x80] sm:$0xff]
        %v189 = vld [vmem:[%s169 + $0x88] sm:$0xff]
        %v190 = vld [vmem:[%s169 + $0x90] sm:$0xff]
        %v191 = vld [vmem:[%s169 + $0x98] sm:$0xff]
        %v192 = vld [vmem:[%s169 + $0xa0] sm:$0xff]
        %v193 = vld [vmem:[%s169 + $0xa8] sm:$0xff]
        %v194 = vld [vmem:[%s169 + $0xb0] sm:$0xff]
        %v195 = vld [vmem:[%s169 + $0xb8] sm:$0xff]
        %v196 = vld [vmem:[%s169 + $0xc0] sm:$0xff]
        %v197 = vld [vmem:[%s169 + $0xc8] sm:$0xff]
        %v198 = vld [vmem:[%s169 + $0xd0] sm:$0xff]
        %v199 = vld [vmem:[%s169 + $0xd8] sm:$0xff]
        %v200 = vld [vmem:[%s169 + $0xe0] sm:$0xff]
        %v201 = vld [vmem:[%s169 + $0xe8] sm:$0xff]
        %v202 = vld [vmem:[%s169 + $0xf0] sm:$0xff]
        %v203 = vld [vmem:[%s169 + $0xf8] sm:$0xff]
        %v204 = vld [vmem:[%s1] sm:$0x1]
        %v206 = vlaneseq
        %v207 = vshrl.u32 %v206, 7
        %v208 = vsub.s32 0, %v207
        %v209 = vrot.slane %v204, %v208
        %v211 = vmul.f32 %v172, %v209
        %v212 = vmul.f32 %v173, %v209
        %v213 = vmul.f32 %v174, %v209
        %v214 = vmul.f32 %v175, %v209
        %v215 = vmul.f32 %v176, %v209
        %v216 = vmul.f32 %v177, %v209
        %v217 = vmul.f32 %v178, %v209
        %v218 = vmul.f32 %v179, %v209
        %v219 = vmul.f32 %v180, %v209
        %v220 = vmul.f32 %v181, %v209
        %v221 = vmul.f32 %v182, %v209
        %v222 = vmul.f32 %v183, %v209
        %v223 = vmul.f32 %v184, %v209
        %v224 = vmul.f32 %v185, %v209
        %v225 = vmul.f32 %v186, %v209
        %v226 = vmul.f32 %v187, %v209
        %v227 = vmul.f32 %v188, %v209
        %v228 = vmul.f32 %v189, %v209
        %v229 = vmul.f32 %v190, %v209
        %v230 = vmul.f32 %v191, %v209
        %v231 = vmul.f32 %v192, %v209
        %v232 = vmul.f32 %v193, %v209
        %v233 = vmul.f32 %v194, %v209
        %v234 = vmul.f32 %v195, %v209
        %v235 = vmul.f32 %v196, %v209
        %v236 = vmul.f32 %v197, %v209
        %v237 = vmul.f32 %v198, %v209
        %v238 = vmul.f32 %v199, %v209
        %v239 = vmul.f32 %v200, %v209
        %v240 = vmul.f32 %v201, %v209
        %v241 = vmul.f32 %v202, %v209
        %v242 = vmul.f32 %v203, %v209
        %v243 = vld [vmem:[%s2] sm:$0x1]
        %v245 = vlaneseq
        %v246 = vshrl.u32 %v245, 7
        %v247 = vsub.s32 0, %v246
        %v248 = vrot.slane %v243, %v247
        %v250 = vadd.f32 %v211, %v248
        %v251 = vadd.f32 %v212, %v248
        %v252 = vadd.f32 %v213, %v248
        %v253 = vadd.f32 %v214, %v248
        %v254 = vadd.f32 %v215, %v248
        %v255 = vadd.f32 %v216, %v248
        %v256 = vadd.f32 %v217, %v248
        %v257 = vadd.f32 %v218, %v248
        %v258 = vadd.f32 %v219, %v248
        %v259 = vadd.f32 %v220, %v248
        %v260 = vadd.f32 %v221, %v248
        %v261 = vadd.f32 %v222, %v248
        %v262 = vadd.f32 %v223, %v248
        %v263 = vadd.f32 %v224, %v248
        %v264 = vadd.f32 %v225, %v248
        %v265 = vadd.f32 %v226, %v248
        %v266 = vadd.f32 %v227, %v248
        %v267 = vadd.f32 %v228, %v248
        %v268 = vadd.f32 %v229, %v248
        %v269 = vadd.f32 %v230, %v248
        %v270 = vadd.f32 %v231, %v248
        %v271 = vadd.f32 %v232, %v248
        %v272 = vadd.f32 %v233, %v248
        %v273 = vadd.f32 %v234, %v248
        %v274 = vadd.f32 %v235, %v248
        %v275 = vadd.f32 %v236, %v248
        %v276 = vadd.f32 %v237, %v248
        %v277 = vadd.f32 %v238, %v248
        %v278 = vadd.f32 %v239, %v248
        %v279 = vadd.f32 %v240, %v248
        %v280 = vadd.f32 %v241, %v248
        %v281 = vadd.f32 %v242, %v248
        %v282 = vmax.f32 %v250, 0.0
        %v283 = vmax.f32 %v251, 0.0
        %v284 = vmax.f32 %v252, 0.0
        %v285 = vmax.f32 %v253, 0.0
        %v286 = vmax.f32 %v254, 0.0
        %v287 = vmax.f32 %v255, 0.0
        %v288 = vmax.f32 %v256, 0.0
        %v289 = vmax.f32 %v257, 0.0
        %v290 = vmax.f32 %v258, 0.0
        %v291 = vmax.f32 %v259, 0.0
        %v292 = vmax.f32 %v260, 0.0
        %v293 = vmax.f32 %v261, 0.0
        %v294 = vmax.f32 %v262, 0.0
        %v295 = vmax.f32 %v263, 0.0
        %v296 = vmax.f32 %v264, 0.0
        %v297 = vmax.f32 %v265, 0.0
        %v298 = vmax.f32 %v266, 0.0
        %v299 = vmax.f32 %v267, 0.0
        %v300 = vmax.f32 %v268, 0.0
        %v301 = vmax.f32 %v269, 0.0
        %v302 = vmax.f32 %v270, 0.0
        %v303 = vmax.f32 %v271, 0.0
        %v304 = vmax.f32 %v272, 0.0
        %v305 = vmax.f32 %v273, 0.0
        %v306 = vmax.f32 %v274, 0.0
        %v307 = vmax.f32 %v275, 0.0
        %v308 = vmax.f32 %v276, 0.0
        %v309 = vmax.f32 %v277, 0.0
        %v310 = vmax.f32 %v278, 0.0
        %v311 = vmax.f32 %v279, 0.0
        %v312 = vmax.f32 %v280, 0.0
        %v313 = vmax.f32 %v281, 0.0
        %314 = vst [vmem:[%s164] sm:$0xff] %v282
        %315 = vst [vmem:[%s164 + $0x8] sm:$0xff] %v283
        %316 = vst [vmem:[%s164 + $0x10] sm:$0xff] %v284
        %317 = vst [vmem:[%s164 + $0x18] sm:$0xff] %v285
        %318 = vst [vmem:[%s164 + $0x20] sm:$0xff] %v286
        %319 = vst [vmem:[%s164 + $0x28] sm:$0xff] %v287
        %320 = vst [vmem:[%s164 + $0x30] sm:$0xff] %v288
        %321 = vst [vmem:[%s164 + $0x38] sm:$0xff] %v289
        %322 = vst [vmem:[%s164 + $0x40] sm:$0xff] %v290
        %323 = vst [vmem:[%s164 + $0x48] sm:$0xff] %v291
        %324 = vst [vmem:[%s164 + $0x50] sm:$0xff] %v292
        %325 = vst [vmem:[%s164 + $0x58] sm:$0xff] %v293
        %326 = vst [vmem:[%s164 + $0x60] sm:$0xff] %v294
        %327 = vst [vmem:[%s164 + $0x68] sm:$0xff] %v295
        %328 = vst [vmem:[%s164 + $0x70] sm:$0xff] %v296
        %329 = vst [vmem:[%s164 + $0x78] sm:$0xff] %v297
        %330 = vst [vmem:[%s164 + $0x80] sm:$0xff] %v298
        %331 = vst [vmem:[%s164 + $0x88] sm:$0xff] %v299
        %332 = vst [vmem:[%s164 + $0x90] sm:$0xff] %v300
        %333 = vst [vmem:[%s164 + $0x98] sm:$0xff] %v301
        %334 = vst [vmem:[%s164 + $0xa0] sm:$0xff] %v302
        %335 = vst [vmem:[%s164 + $0xa8] sm:$0xff] %v303
        %336 = vst [vmem:[%s164 + $0xb0] sm:$0xff] %v304
        %337 = vst [vmem:[%s164 + $0xb8] sm:$0xff] %v305
        %338 = vst [vmem:[%s164 + $0xc0] sm:$0xff] %v306
        %339 = vst [vmem:[%s164 + $0xc8] sm:$0xff] %v307
        %340 = vst [vmem:[%s164 + $0xd0] sm:$0xff] %v308
        %341 = vst [vmem:[%s164 + $0xd8] sm:$0xff] %v309
        %342 = vst [vmem:[%s164 + $0xe0] sm:$0xff] %v310
        %343 = vst [vmem:[%s164 + $0xe8] sm:$0xff] %v311
        %344 = vst [vmem:[%s164 + $0xf0] sm:$0xff] %v312
        %345 = vst [vmem:[%s164 + $0xf8] sm:$0xff] %v313
        %s346 = sand.u32 %s93, 1
        %s347 = scalar_lea.sflag [#allocation3], %s346
        %s348 = sand.u32 %s93, 1
        %s349 = smul.addr %s348, 256
        %s350 = scalar_lea.vmem [#allocation2], %s349
        // Predicated region
        $region33: #{extract_forward.3} parent=31 // pred_check
          %p351 = pneg %p103
        $region34: #{extract_forward.3} parent=31 // pred_check_branch
          %353 = sbr.rel (%p351) target = $region36
        $region35: #{extract_forward.3} parent=31 // pred_region
          %s354 = smul.u32 32, %s17
          %s356 = ssub.s32 4096, 4096
          %357 = vsyncadd %s347, %s356
          %s358 = smul.addr %s354, 128
          %s359 = scalar_lea.hbm %s3, %s358
          %s360 = sshll.u32 %s350, 4
          %s361 = int_to_ptr.vmem [resolvable:$true] %s360
          %366 = dma.vmem_to_hbm [thread:$0]  %s361, 4096, %s359, %s347, 128, 128, 8
        $region36: #{extract_forward.3} parent=31 // pred_fallthru
          _
      $region32: #{extract_forward.3} parent=5 // pred_fallthru
        _
      %p367 = scmp.le.s32.totalorder 2, %s12
      // Predicated region
      $region37: #{extract_forward.3} parent=5 // pred_check
        %p368 = pneg %p367
      $region38: #{extract_forward.3} parent=5 // pred_check_branch
        %370 = sbr.rel (%p368) target = $region40
      $region39: #{extract_forward.3} parent=5 // pred_region
        %s371 = ssub.s32 %s12, 2
        // Predicated region
        $region41: #{extract_forward.3} parent=39 // pred_check
          %p372 = pneg %p109
        $region42: #{extract_forward.3} parent=39 // pred_check_branch
          %374 = sbr.rel (%p372) target = $region44
        $region43: #{extract_forward.3} parent=39 // pred_region
          %s375 = sand.u32 %s94, 1
          %s376 = scalar_lea.sflag [#allocation3], %s375
          %s377 = sand.u32 %s94, 1
          %s378 = smul.addr %s377, 256
          %s379 = scalar_lea.vmem [#allocation2], %s378
          %380 = dma.done %s376, 4096
        $region44: #{extract_forward.3} parent=39 // pred_fallthru
          _
      $region40: #{extract_forward.3} parent=5 // pred_fallthru
        _
    $region6: #{extract_forward.3} parent=1 // loop_footer
      %s16 = sadd.s32 1, %s12
    $region7: #{extract_forward.3} parent=1 // loop_footer_branch
      %11 = sbr.rel target = $region3
    $region8: #{extract_forward.3} parent=1 // loop_exit
      _
    %381 = vsyncpa [#allocation3], 1
    %s382 = scalar_lea.sflag [#allocation3], 1
    %383 = vsyncpa %s382, 1

</llo_original>
